<compile_context>
chip_gen: v5e
topology: v5e:2x2
jax: 0.10.0
libtpu: 0.0.40
codegen_flags: <defaults>
</compile_context>

<pallas_src>
from typing import List, NamedTuple, Optional

import jax
import jax.numpy as jnp
from jax.experimental import pallas as pl
from jax.experimental.pallas import tpu as pltpu


# ----------------------------- net configuration ----------------------------
C_IN = 4
C_OUT = 8
K = 3
H = W = 16
NUM_CLASSES = 10
P = H * W                 # spatial positions per image
CK = K * K * C_IN         # im2col patch size

# orchestrator / perturbation config (runner_config equivalent)
RUNNER_CONFIG = dict(
    is_perturb_reg=True,
    perturb_mean=0.0,
    perturb_variance=0.01,
    perturb_amount=3,
    perturb_start=0,
)


class ModelOutputs(NamedTuple):
    forward_out: jax.Array
    perturbations: Optional[List[jax.Array]]


# ------------------------------- Pallas kernel -------------------------------
def net_fwd_kernel(xcols_ref, wconv_ref, bconv_ref, pool_ref, wfc_ref, bfc_ref,
                   out_ref):
    """One batch tile of TILE_N images, ALL weight variants at once.

    xcols_ref: (CK, TILE_N*P)        bf16  im2col patches, batch*spatial on lanes
    wconv_ref: (V*C_OUT, CK)         bf16  conv weights, variants stacked on rows
    bconv_ref: (V*C_OUT, 1)          f32
    pool_ref : (TILE_N*P, TILE_N)    f32   block-structured averaging matrix
    wfc_ref  : (V*NC, V*C_OUT)       f32   block-diagonal FC heads over variants
    bfc_ref  : (V*NC, 1)             f32
    out_ref  : (1, V*NC, TILE_N)     f32
    """
    # conv as matmul: lane-dense (V*C_OUT, TILE_N*P) output, f32 accumulation.
    conv = jnp.dot(wconv_ref[...], xcols_ref[...],
                   preferred_element_type=jnp.float32)
    conv = jnp.maximum(conv + bconv_ref[...], 0.0)          # bias + ReLU (VPU)

    # per-image global average pool as a matmul: (V*C_OUT, TILE_N).
    pooled = jnp.dot(conv, pool_ref[...], preferred_element_type=jnp.float32)

    # all FC heads in one block-diagonal matmul, once per tile.
    logits = jnp.dot(wfc_ref[...], pooled,
                     preferred_element_type=jnp.float32) + bfc_ref[...]
    out_ref[0] = logits.astype(out_ref.dtype)


# ------------------------------ glue (plain JAX) -----------------------------
def im2col_lane_dense(x_nchw):
    """NCHW -> (CK, N*H*W) im2col, stride 1, padding 1.

    Row ordering is (di, dj, c_in); column ordering is (n, i, j) — lane-dense.
    """
    n = x_nchw.shape[0]
    x = jnp.transpose(x_nchw.astype(jnp.float32), (0, 2, 3, 1))     # NHWC
    x = jnp.pad(x, ((0, 0), (1, 1), (1, 1), (0, 0)))
    cols = [x[:, di:di + H, dj:dj + W, :] for di in range(K) for dj in range(K)]
    patches = jnp.stack(cols, axis=0)                               # (K*K,N,H,W,C)
    patches = jnp.transpose(patches, (0, 4, 1, 2, 3))               # (K*K,C,N,H,W)
    return patches.reshape(CK, n * P)


def pack_variants(variant_params):
    """Stack V weight variants into the fused-kernel layouts."""
    v = len(variant_params)
    wconv = jnp.stack([jnp.transpose(p["w_conv"], (0, 2, 3, 1)).reshape(C_OUT, CK)
                       for p in variant_params])                    # (V,C_OUT,CK)
    bconv = jnp.stack([p["b_conv"] for p in variant_params])        # (V,C_OUT)
    wfc = jnp.stack([p["w_fc"] for p in variant_params])            # (V,NC,C_OUT)
    bfc = jnp.stack([p["b_fc"] for p in variant_params])            # (V,NC)

    wconv_all = wconv.reshape(v * C_OUT, CK)
    bconv_all = bconv.reshape(v * C_OUT, 1)
    # block-diagonal FC so one matmul evaluates every variant's head
    eye = jnp.eye(v, dtype=wfc.dtype)
    wfc_bd = (eye[:, None, :, None] * wfc[:, :, None, :]
              ).reshape(v * NUM_CLASSES, v * C_OUT)
    bfc_all = bfc.reshape(v * NUM_CLASSES, 1)
    return wconv_all, bconv_all, wfc_bd, bfc_all


def _pick_tile_n(n, max_lanes_per_tile=2048):
    """Largest divisor of n whose im2col tile spans <= max_lanes_per_tile columns.

    Keeps the double-buffered activation tile at a few hundred KiB — well inside
    the 32 MiB scoped-VMEM default / 64 MiB physical VMEM on v7x (and trivially
    inside v5e/v6e's 128 MiB)."""
    tn = max(1, min(n, max_lanes_per_tile // P))
    while n % tn:
        tn -= 1
    return tn


def fused_net_forward(x_nchw, variant_params):
    """Run the CNN for all V weight variants with a single pallas_call.

    Returns float32 logits of shape (V, N, NUM_CLASSES)."""
    n = x_nchw.shape[0]
    v = len(variant_params)
    tile_n = _pick_tile_n(n)
    nt = n // tile_n
    tm = tile_n * P
    vc = v * C_OUT
    vnc = v * NUM_CLASSES

    xcols = im2col_lane_dense(x_nchw).astype(jnp.bfloat16)          # (CK, N*P)
    wconv_all, bconv_all, wfc_bd, bfc_all = pack_variants(variant_params)
    pool_mat = jnp.repeat(jnp.eye(tile_n, dtype=jnp.float32), P, axis=0) / P

    out = pl.pallas_call(
        net_fwd_kernel,
        out_shape=jax.ShapeDtypeStruct((nt, vnc, tile_n), jnp.float32),
        grid_spec=pltpu.PrefetchScalarGridSpec(
            num_scalar_prefetch=0,
            grid=(nt,),
            in_specs=[
                pl.BlockSpec((CK, tm), lambda i: (0, i)),     # activations (tiled)
                pl.BlockSpec((vc, CK), lambda i: (0, 0)),     # weights resident
                pl.BlockSpec((vc, 1), lambda i: (0, 0)),
                pl.BlockSpec((tm, tile_n), lambda i: (0, 0)),
                pl.BlockSpec((vnc, vc), lambda i: (0, 0)),
                pl.BlockSpec((vnc, 1), lambda i: (0, 0)),
            ],
            out_specs=pl.BlockSpec((1, vnc, tile_n), lambda i: (i, 0, 0)),
        ),
        compiler_params=pltpu.CompilerParams(
            dimension_semantics=("parallel",)),   # both TCs on v7x; no-op on 1-TC chips
    )(xcols, wconv_all.astype(jnp.bfloat16), bconv_all, pool_mat, wfc_bd, bfc_all)

    # (NT, V*NC, TILE_N) -> (V, N, NUM_CLASSES)
    logits = jnp.transpose(out, (1, 0, 2)).reshape(v, NUM_CLASSES, n)
    return jnp.transpose(logits, (0, 2, 1))


def init_params(key):
    """Deterministic parameter init; conv weight in PyTorch (Cout,Cin,K,K) layout."""
    k1, k2, k3, k4 = jax.random.split(key, 4)
    return dict(
        w_conv=jax.random.normal(k1, (C_OUT, C_IN, K, K), jnp.float32) * 0.1,
        b_conv=jax.random.normal(k2, (C_OUT,), jnp.float32) * 0.1,
        w_fc=jax.random.normal(k3, (NUM_CLASSES, C_OUT), jnp.float32) * 0.1,
        b_fc=jax.random.normal(k4, (NUM_CLASSES,), jnp.float32) * 0.1,
    )


# -------------------------- orchestrator (JAX port) --------------------------
class ModelOrchestratorPerturb:
    """JAX/Pallas port of ModelOrchestratorPerturb.forward semantics.

    Checkpoint save/load/delete, logging and post-training quantization from the
    PyTorch base class are host-side I/O and are not kernel work (omitted)."""

    def __init__(self, params, runner_config):
        self.params = params
        self.perturb_mean = float(runner_config["perturb_mean"])
        self.perturb_variance = float(runner_config["perturb_variance"])
        self.perturb_amount = int(runner_config["perturb_amount"])
        self.perturb_start = int(runner_config["perturb_start"])
        self.epochs_trained = 0
        self.training = True

    def set_epochs_trained(self, epochs_trained):
        self.epochs_trained = epochs_trained

    def _perturbed(self, key):
        # Additive Gaussian noise on every parameter tensor (weights and biases).
        # TODO(synk): if Perturbation.prepare_model_weights only parametrizes
        # `.weight` tensors in the source repo, restrict this to w_conv / w_fc.
        std = jnp.sqrt(jnp.asarray(self.perturb_variance, jnp.float32))
        items = sorted(self.params.items())
        keys = jax.random.split(key, len(items))
        return {name: val + self.perturb_mean
                + std * jax.random.normal(k, val.shape, jnp.float32)
                for (name, val), k in zip(items, keys)}

    def variant_params(self, key):
        """Base params followed by perturb_amount independently perturbed copies."""
        variants = [self.params]
        for i in range(self.perturb_amount):
            variants.append(self._perturbed(jax.random.fold_in(key, i)))
        return variants

    def forward(self, x, key):
        perturbing = self.training and self.epochs_trained >= self.perturb_start
        variants = self.variant_params(key) if perturbing else [self.params]
        logits = fused_net_forward(x, variants)          # one pallas_call total
        forward_out = logits[0]
        perturbations = ([logits[1 + i] for i in range(self.perturb_amount)]
                         if perturbing else None)
        return ModelOutputs(forward_out, perturbations)


# --------------------------------- reference ---------------------------------
def net_forward_ref(x_nchw, params):
    """Pure-JAX (lax.conv) reference for correctness checks."""
    conv = jax.lax.conv_general_dilated(
        x_nchw.astype(jnp.float32), params["w_conv"].astype(jnp.float32),
        window_strides=(1, 1), padding=((1, 1), (1, 1)),
        dimension_numbers=("NCHW", "OIHW", "NCHW"))
    conv = jnp.maximum(conv + params["b_conv"][None, :, None, None], 0.0)
    pooled = jnp.mean(conv, axis=(2, 3))                          # (N, C_OUT)
    return pooled @ params["w_fc"].T + params["b_fc"]


if __name__ == "__main__":
    key = jax.random.PRNGKey(0)
    k_x, k_p, k_noise = jax.random.split(key, 3)

    x = jax.random.normal(k_x, (2, C_IN, H, W), jnp.float32)      # NCHW input
    params = init_params(k_p)

    orch = ModelOrchestratorPerturb(params, RUNNER_CONFIG)
    orch.training = True
    orch.set_epochs_trained(RUNNER_CONFIG["perturb_start"])       # perturbation active

    out = orch.forward(x, k_noise)
    jax.block_until_ready(out.forward_out)
    assert out.perturbations is not None
    for pv in out.perturbations:
        jax.block_until_ready(pv)

    # structural checks
    assert out.forward_out.shape == (2, NUM_CLASSES)
    assert len(out.perturbations) == RUNNER_CONFIG["perturb_amount"]

    # base forward vs f32 lax.conv reference (kernel conv uses bf16 inputs / f32 acc)
    ref0 = net_forward_ref(x, params)
    assert jnp.allclose(out.forward_out, ref0, atol=2e-2, rtol=2e-2), "base forward mismatch"

    # fixed-noise check of the first perturbed forward
    variants = orch.variant_params(k_noise)
    ref1 = net_forward_ref(x, variants[1])
    assert jnp.allclose(out.perturbations[0], ref1, atol=2e-2, rtol=2e-2), "perturbed forward mismatch"

    # eval mode: no perturbations
    orch.training = False
    out_eval = orch.forward(x, k_noise)
    jax.block_until_ready(out_eval.forward_out)
    assert out_eval.perturbations is None
    assert jnp.allclose(out_eval.forward_out, ref0, atol=2e-2, rtol=2e-2), "eval forward mismatch"

    print("KERNEL_OK")
</pallas_src>

<mosaic_0001>
module attributes {stable_mosaic.version = 11 : i64} {
  func.func @net_fwd_kernel(%arg0: i32, %arg1: memref<36x512xbf16, #tpu.memory_space<vmem>>, %arg2: memref<32x36xbf16, #tpu.memory_space<vmem>>, %arg3: memref<32x1xf32, #tpu.memory_space<vmem>>, %arg4: memref<512x2xf32, #tpu.memory_space<vmem>>, %arg5: memref<40x32xf32, #tpu.memory_space<vmem>>, %arg6: memref<40x1xf32, #tpu.memory_space<vmem>>, %arg7: memref<1x40x2xf32, #tpu.memory_space<vmem>>) attributes {dimension_semantics = [#tpu.dimension_semantics<parallel>], iteration_bounds = array<i64: 1>, scalar_prefetch = 0 : i64, scratch_operands = 0 : i64, tpu.core_type = #tpu.core_type<tc>, window_params = [{transform_indices = @transform_0, window_bounds = array<i64: 36, 512>}, {pipeline_mode = #tpu.pipeline_mode<synchronous>, transform_indices = @transform_1, window_bounds = array<i64: 32, 36>}, {pipeline_mode = #tpu.pipeline_mode<synchronous>, transform_indices = @transform_2, window_bounds = array<i64: 32, 1>}, {pipeline_mode = #tpu.pipeline_mode<synchronous>, transform_indices = @transform_3, window_bounds = array<i64: 512, 2>}, {pipeline_mode = #tpu.pipeline_mode<synchronous>, transform_indices = @transform_4, window_bounds = array<i64: 40, 32>}, {pipeline_mode = #tpu.pipeline_mode<synchronous>, transform_indices = @transform_5, window_bounds = array<i64: 40, 1>}, {transform_indices = @transform_6, window_bounds = array<i64: 1, 40, 2>}]} {
    %c0 = arith.constant 0 : index
    %c0_0 = arith.constant 0 : index
    %0 = vector.load %arg2[%c0, %c0_0] : memref<32x36xbf16, #tpu.memory_space<vmem>>, vector<32x36xbf16>
    %c0_1 = arith.constant 0 : index
    %c0_2 = arith.constant 0 : index
    %1 = vector.load %arg1[%c0_1, %c0_2] : memref<36x512xbf16, #tpu.memory_space<vmem>>, vector<36x512xbf16>
    %cst = arith.constant dense<0.000000e+00> : vector<32x512xf32>
    %2 = tpu.matmul %0, %1, %cst {dimension_numbers = #tpu.dot_dimension_numbers<[1], [0], [0], [1], [0, 0, 1, 1], [], []>} : vector<32x36xbf16>, vector<36x512xbf16>, vector<32x512xf32> -> vector<32x512xf32>
    %c0_3 = arith.constant 0 : index
    %c0_4 = arith.constant 0 : index
    %3 = vector.load %arg3[%c0_3, %c0_4] : memref<32x1xf32, #tpu.memory_space<vmem>>, vector<32x1xf32>
    %4 = vector.broadcast %3 : vector<32x1xf32> to vector<32x512xf32>
    %5 = arith.addf %2, %4 : vector<32x512xf32>
    %cst_5 = arith.constant 0.000000e+00 : f32
    %6 = vector.broadcast %cst_5 : f32 to vector<32x512xf32>
    %7 = arith.maximumf %5, %6 : vector<32x512xf32>
    %c0_6 = arith.constant 0 : index
    %c0_7 = arith.constant 0 : index
    %8 = vector.load %arg4[%c0_6, %c0_7] : memref<512x2xf32, #tpu.memory_space<vmem>>, vector<512x2xf32>
    %cst_8 = arith.constant dense<0.000000e+00> : vector<32x2xf32>
    %9 = tpu.matmul %7, %8, %cst_8 {dimension_numbers = #tpu.dot_dimension_numbers<[1], [0], [0], [1], [0, 0, 1, 1], [], []>} : vector<32x512xf32>, vector<512x2xf32>, vector<32x2xf32> -> vector<32x2xf32>
    %c0_9 = arith.constant 0 : index
    %c0_10 = arith.constant 0 : index
    %10 = vector.load %arg5[%c0_9, %c0_10] : memref<40x32xf32, #tpu.memory_space<vmem>>, vector<40x32xf32>
    %cst_11 = arith.constant dense<0.000000e+00> : vector<40x2xf32>
    %11 = tpu.matmul %10, %9, %cst_11 {dimension_numbers = #tpu.dot_dimension_numbers<[1], [0], [0], [1], [0, 0, 1, 1], [], []>} : vector<40x32xf32>, vector<32x2xf32>, vector<40x2xf32> -> vector<40x2xf32>
    %c0_12 = arith.constant 0 : index
    %c0_13 = arith.constant 0 : index
    %12 = vector.load %arg6[%c0_12, %c0_13] : memref<40x1xf32, #tpu.memory_space<vmem>>, vector<40x1xf32>
    %13 = vector.broadcast %12 : vector<40x1xf32> to vector<40x2xf32>
    %14 = arith.addf %11, %13 : vector<40x2xf32>
    %c0_14 = arith.constant 0 : index
    %c0_15 = arith.constant 0 : index
    %c0_16 = arith.constant 0 : index
    %15 = vector.load %arg7[%c0_14, %c0_15, %c0_16] : memref<1x40x2xf32, #tpu.memory_space<vmem>>, vector<1x40x2xf32>
    %16 = vector.shape_cast %15 : vector<1x40x2xf32> to vector<40x2xf32>
    %17 = vector.shape_cast %14 : vector<40x2xf32> to vector<1x40x2xf32>
    tpu.vector_store %arg7[%c0_14, %c0_15, %c0_16], %17 {strides = array<i32>} : memref<1x40x2xf32, #tpu.memory_space<vmem>>, vector<1x40x2xf32>,
    return
  }
  func.func @transform_0(%arg0: i32) -> (i32, i32) {
    %c0_i32 = arith.constant 0 : i32
    %c0_i32_0 = arith.constant 0 : i32
    return %c0_i32, %arg0 : i32, i32
  }
  func.func @transform_1(%arg0: i32) -> (i32, i32) {
    %c0_i32 = arith.constant 0 : i32
    %c0_i32_0 = arith.constant 0 : i32
    %c0_i32_1 = arith.constant 0 : i32
    return %c0_i32, %c0_i32_0 : i32, i32
  }
  func.func @transform_2(%arg0: i32) -> (i32, i32) {
    %c0_i32 = arith.constant 0 : i32
    %c0_i32_0 = arith.constant 0 : i32
    %c0_i32_1 = arith.constant 0 : i32
    return %c0_i32, %c0_i32_0 : i32, i32
  }
  func.func @transform_3(%arg0: i32) -> (i32, i32) {
    %c0_i32 = arith.constant 0 : i32
    %c0_i32_0 = arith.constant 0 : i32
    %c0_i32_1 = arith.constant 0 : i32
    return %c0_i32, %c0_i32_0 : i32, i32
  }
  func.func @transform_4(%arg0: i32) -> (i32, i32) {
    %c0_i32 = arith.constant 0 : i32
    %c0_i32_0 = arith.constant 0 : i32
    %c0_i32_1 = arith.constant 0 : i32
    return %c0_i32, %c0_i32_0 : i32, i32
  }
  func.func @transform_5(%arg0: i32) -> (i32, i32) {
    %c0_i32 = arith.constant 0 : i32
    %c0_i32_0 = arith.constant 0 : i32
    %c0_i32_1 = arith.constant 0 : i32
    return %c0_i32, %c0_i32_0 : i32, i32
  }
  func.func @transform_6(%arg0: i32) -> (i32, i32, i32) {
    %c0_i32 = arith.constant 0 : i32
    %c0_i32_0 = arith.constant 0 : i32
    %c0_i32_1 = arith.constant 0 : i32
    return %arg0, %c0_i32, %c0_i32_0 : i32, i32, i32
  }
}

</mosaic_0001>

<llo_original>
// kernel: tpu_custom_call.1
$region0: #{tpu_custom_call.1}
  #allocation0 [shape = 'u32[]', space=smem, size = 0x4, offset = 0x4, fixed_abs, tag = 'smem constant byte address 0x4 - core index']
  #allocation1 [shape = 'u32[72,128]{1,0:T(1,128)}', space=vmem, size = 0x9000, scoped, tag = 'internal scratch']
  %s0 = inlined_call_operand.vmem [shape: bf16[36,512], index: 0, kind: input, shape index: {}]
  %s1 = inlined_call_operand.vmem [shape: bf16[32,36], index: 1, kind: input, shape index: {}]
  %s2 = inlined_call_operand.vmem [shape: f32[32,1], index: 2, kind: input, shape index: {}]
  %s3 = inlined_call_operand.vmem [shape: f32[512,2], index: 3, kind: input, shape index: {}]
  %s4 = inlined_call_operand.vmem [shape: f32[40,32], index: 4, kind: input, shape index: {}]
  %s5 = inlined_call_operand.vmem [shape: f32[40,1], index: 5, kind: input, shape index: {}]
  %s6 = inlined_call_operand.vmem [shape: f32[1,40,2], index: 6, kind: output, shape index: {}]
  %s7 = sld [smem:[#allocation0]]
  $region34: #{tpu_custom_call.1} parent=0
    _
  %s9 = ssub.s32 1, %s7
  %s10 = scalar_select 0, %s9, %s7
  // Predicated region
  $region2: #{tpu_custom_call.1} parent=0 // pred_check
    _
  $region3: #{tpu_custom_call.1} parent=0 // pred_check_branch
    %12 = sbr.rel (0) target = $region5
  $region4: #{tpu_custom_call.1} parent=0 // pred_region
    _
  $region5: #{tpu_custom_call.1} parent=0 // pred_fallthru
    _
  // Predicated region
  $region6: #{tpu_custom_call.1} parent=0 // pred_check
    _
  $region7: #{tpu_custom_call.1} parent=0 // pred_check_branch
    %14 = sbr.rel (0) target = $region9
  $region8: #{tpu_custom_call.1} parent=0 // pred_region
    _
  $region9: #{tpu_custom_call.1} parent=0 // pred_fallthru
    _
  // Predicated region
  $region10: #{tpu_custom_call.1} parent=0 // pred_check
    _
  $region11: #{tpu_custom_call.1} parent=0 // pred_check_branch
    %16 = sbr.rel (0) target = $region13
  $region12: #{tpu_custom_call.1} parent=0 // pred_region
    _
  $region13: #{tpu_custom_call.1} parent=0 // pred_fallthru
    _
  // Predicated region
  $region14: #{tpu_custom_call.1} parent=0 // pred_check
    _
  $region15: #{tpu_custom_call.1} parent=0 // pred_check_branch
    %18 = sbr.rel (0) target = $region17
  $region16: #{tpu_custom_call.1} parent=0 // pred_region
    _
  $region17: #{tpu_custom_call.1} parent=0 // pred_fallthru
    _
  // Predicated region
  $region18: #{tpu_custom_call.1} parent=0 // pred_check
    _
  $region19: #{tpu_custom_call.1} parent=0 // pred_check_branch
    %20 = sbr.rel (0) target = $region21
  $region20: #{tpu_custom_call.1} parent=0 // pred_region
    _
  $region21: #{tpu_custom_call.1} parent=0 // pred_fallthru
    _
  // Predicated region
  $region22: #{tpu_custom_call.1} parent=0 // pred_check
    _
  $region23: #{tpu_custom_call.1} parent=0 // pred_check_branch
    %22 = sbr.rel (0) target = $region25
  $region24: #{tpu_custom_call.1} parent=0 // pred_region
    _
  $region25: #{tpu_custom_call.1} parent=0 // pred_fallthru
    _
  %v24 = vld [vmem:[%s1] sm:$0xf]
  %v25 = vld [vmem:[%s1 + $0x4] sm:$0xf]
  %v26 = vld [vmem:[%s1 + $0x8] sm:$0xf]
  %v27 = vld [vmem:[%s1 + $0xc] sm:$0xf]
  %v28 = vld [vmem:[%s0] sm:$0xff]
  %v29 = vld [vmem:[%s0 + $0x8] sm:$0xff]
  %v30 = vld [vmem:[%s0 + $0x10] sm:$0xff]
  %v31 = vld [vmem:[%s0 + $0x18] sm:$0xff]
  %v32 = vld [vmem:[%s0 + $0x20] sm:$0xff]
  %v33 = vld [vmem:[%s0 + $0x28] sm:$0xff]
  %v34 = vld [vmem:[%s0 + $0x30] sm:$0xff]
  %v35 = vld [vmem:[%s0 + $0x38] sm:$0xff]
  %v36 = vld [vmem:[%s0 + $0x40] sm:$0x33]
  %v37 = vld [vmem:[%s0 + $0x48] sm:$0x33]
  %v38 = vld [vmem:[%s2] sm:$0xff]
  %v39 = vld [vmem:[%s2 + $0x8] sm:$0xff]
  %v40 = vld [vmem:[%s2 + $0x10] sm:$0xff]
  %v41 = vld [vmem:[%s2 + $0x18] sm:$0xff]
  %43 = vset.pattern.permute.xlu0 0
  %44 = vperm.xlu0 %43, %v38
  %v45 = vpop.permute.xlu0 %44
  %48 = vset.pattern.permute.xlu0 0
  %49 = vperm.xlu0 %48, %v39
  %v50 = vpop.permute.xlu0 %49
  %53 = vset.pattern.permute.xlu0 0
  %54 = vperm.xlu0 %53, %v40
  %v55 = vpop.permute.xlu0 %54
  %58 = vset.pattern.permute.xlu0 0
  %59 = vperm.xlu0 %58, %v41
  %v60 = vpop.permute.xlu0 %59
  %v66 = vunpack.c.l.b16 %v24
  %v67 = vunpack.c.l.b16 %v25
  %v68 = vunpack.c.l.b16 %v26
  %v69 = vunpack.c.l.b16 %v27
  %v70 = vpack.c.b16 %v67, %v66
  %v71 = vpack.c.b16 %v69, %v68
  %v82 = vunpack.c.l.b16 %v28
  %v83 = vunpack.c.h.b16 %v28
  %v84 = vunpack.c.l.b16 %v29
  %v85 = vunpack.c.h.b16 %v29
  %v86 = vunpack.c.l.b16 %v30
  %v87 = vunpack.c.h.b16 %v30
  %v88 = vunpack.c.l.b16 %v31
  %v89 = vunpack.c.h.b16 %v31
  %v90 = vunpack.c.l.b16 %v32
  %v91 = vunpack.c.h.b16 %v32
  %v92 = vunpack.c.l.b16 %v33
  %v93 = vunpack.c.h.b16 %v33
  %v94 = vunpack.c.l.b16 %v34
  %v95 = vunpack.c.h.b16 %v34
  %v96 = vunpack.c.l.b16 %v35
  %v97 = vunpack.c.h.b16 %v35
  %v98 = vunpack.c.l.b16 %v36
  %v99 = vunpack.c.h.b16 %v36
  %v100 = vunpack.c.l.b16 %v37
  %v101 = vunpack.c.h.b16 %v37
  %v102 = vpack.c.b16 %v86, %v82
  %v103 = vpack.c.b16 %v87, %v83
  %v104 = vpack.c.b16 %v88, %v84
  %v105 = vpack.c.b16 %v89, %v85
  %v106 = vpack.c.b16 %v94, %v90
  %v107 = vpack.c.b16 %v95, %v91
  %v108 = vpack.c.b16 %v96, %v92
  %v109 = vpack.c.b16 %v97, %v93
  %v110 = vpack.c.b16 %v98, %v98
  %v111 = vpack.c.b16 %v99, %v99
  %v112 = vpack.c.b16 %v100, %v100
  %v113 = vpack.c.b16 %v101, %v101
  %vm122 = vcmask 293888
  %v124 = vsel %vm122, %v70, 0
  %v127 = vsel %vm122, %v71, 0
  %vm129 = vcmask 1041408
  %v131 = vsel %vm129, %v110, 0
  %v134 = vsel %vm129, %v111, 0
  %v137 = vsel %vm129, %v112, 0
  %v140 = vsel %vm129, %v113, 0
  %142 = vmatpush.bf16.msra.mxu0 0
  %143 = vmatpush.bf16.msra.mxu0 0
  %144 = vmatpush.bf16.msra.mxu0 0
  %145 = vmatpush.bf16.msra.mxu0 0
  %146 = vmatpush.bf16.msra.mxu0 0
  %147 = vmatpush.bf16.msra.mxu0 %v131
  %148 = vmatpush.bf16.msra.mxu0 %v106
  %149 = vmatpush.bf16.msra.mxu0 %v102
  %150 = vmatmul.bf16.gmra.mxu0 %v124
  %v151 = vpop.f32.mrf.mxu0
  %v152 = vadd.f32 %v45, %v151
  %v153 = vpop.f32.mrf.mxu0
  %v154 = vadd.f32 %v50, %v153
  %155 = vmatmul.bf16.gmra.mxu0 %v127
  %v156 = vpop.f32.mrf.mxu0
  %v157 = vadd.f32 %v55, %v156
  %v158 = vpop.f32.mrf.mxu0
  %v159 = vadd.f32 %v60, %v158
  %160 = vdwg.mxu0
  %161 = vmatpush.bf16.msra.mxu0 0
  %162 = vmatpush.bf16.msra.mxu0 0
  %163 = vmatpush.bf16.msra.mxu0 0
  %164 = vmatpush.bf16.msra.mxu0 0
  %165 = vmatpush.bf16.msra.mxu0 0
  %166 = vmatpush.bf16.msra.mxu0 %v134
  %167 = vmatpush.bf16.msra.mxu0 %v107
  %168 = vmatpush.bf16.msra.mxu0 %v103
  %169 = vmatmul.bf16.gmra.mxu0 %v124
  %v170 = vpop.f32.mrf.mxu0
  %v171 = vadd.f32 %v45, %v170
  %v172 = vpop.f32.mrf.mxu0
  %v173 = vadd.f32 %v50, %v172
  %174 = vmatmul.bf16.gmra.mxu0 %v127
  %v175 = vpop.f32.mrf.mxu0
  %v176 = vadd.f32 %v55, %v175
  %v177 = vpop.f32.mrf.mxu0
  %v178 = vadd.f32 %v60, %v177
  %179 = vdwg.mxu0
  %180 = vmatpush.bf16.msra.mxu0 0
  %181 = vmatpush.bf16.msra.mxu0 0
  %182 = vmatpush.bf16.msra.mxu0 0
  %183 = vmatpush.bf16.msra.mxu0 0
  %184 = vmatpush.bf16.msra.mxu0 0
  %185 = vmatpush.bf16.msra.mxu0 %v137
  %186 = vmatpush.bf16.msra.mxu0 %v108
  %187 = vmatpush.bf16.msra.mxu0 %v104
  %188 = vmatmul.bf16.gmra.mxu0 %v124
  %v189 = vpop.f32.mrf.mxu0
  %v190 = vadd.f32 %v45, %v189
  %v191 = vpop.f32.mrf.mxu0
  %v192 = vadd.f32 %v50, %v191
  %193 = vmatmul.bf16.gmra.mxu0 %v127
  %v194 = vpop.f32.mrf.mxu0
  %v195 = vadd.f32 %v55, %v194
  %v196 = vpop.f32.mrf.mxu0
  %v197 = vadd.f32 %v60, %v196
  %198 = vdwg.mxu0
  %199 = vmatpush.bf16.msra.mxu0 0
  %200 = vmatpush.bf16.msra.mxu0 0
  %201 = vmatpush.bf16.msra.mxu0 0
  %202 = vmatpush.bf16.msra.mxu0 0
  %203 = vmatpush.bf16.msra.mxu0 0
  %204 = vmatpush.bf16.msra.mxu0 %v140
  %205 = vmatpush.bf16.msra.mxu0 %v109
  %206 = vmatpush.bf16.msra.mxu0 %v105
  %207 = vmatmul.bf16.gmra.mxu0 %v124
  %v208 = vpop.f32.mrf.mxu0
  %v209 = vadd.f32 %v45, %v208
  %v210 = vpop.f32.mrf.mxu0
  %v211 = vadd.f32 %v50, %v210
  %212 = vmatmul.bf16.gmra.mxu0 %v127
  %v213 = vpop.f32.mrf.mxu0
  %v214 = vadd.f32 %v55, %v213
  %v215 = vpop.f32.mrf.mxu0
  %v216 = vadd.f32 %v60, %v215
  %217 = vdwg.mxu0
  %v218 = vmax.f32 %v152, 0.0
  %v219 = vmax.f32 %v171, 0.0
  %v220 = vmax.f32 %v190, 0.0
  %v221 = vmax.f32 %v209, 0.0
  %v222 = vmax.f32 %v154, 0.0
  %v223 = vmax.f32 %v173, 0.0
  %v224 = vmax.f32 %v192, 0.0
  %v225 = vmax.f32 %v211, 0.0
  %v226 = vmax.f32 %v157, 0.0
  %v227 = vmax.f32 %v176, 0.0
  %v228 = vmax.f32 %v195, 0.0
  %v229 = vmax.f32 %v214, 0.0
  %v230 = vmax.f32 %v159, 0.0
  %v231 = vmax.f32 %v178, 0.0
  %v232 = vmax.f32 %v197, 0.0
  %v233 = vmax.f32 %v216, 0.0
  %v234 = vld [vmem:[%s3] sm:$0xff]
  %v235 = vld [vmem:[%s3 + $0x8] sm:$0xff]
  %v236 = vld [vmem:[%s3 + $0x10] sm:$0xff]
  %v237 = vld [vmem:[%s3 + $0x18] sm:$0xff]
  %v238 = vld [vmem:[%s3 + $0x20] sm:$0xff]
  %v239 = vld [vmem:[%s3 + $0x28] sm:$0xff]
  %v240 = vld [vmem:[%s3 + $0x30] sm:$0xff]
  %v241 = vld [vmem:[%s3 + $0x38] sm:$0xff]
  %v242 = vld [vmem:[%s3 + $0x40] sm:$0xff]
  %v243 = vld [vmem:[%s3 + $0x48] sm:$0xff]
  %v244 = vld [vmem:[%s3 + $0x50] sm:$0xff]
  %v245 = vld [vmem:[%s3 + $0x58] sm:$0xff]
  %v246 = vld [vmem:[%s3 + $0x60] sm:$0xff]
  %v247 = vld [vmem:[%s3 + $0x68] sm:$0xff]
  %v248 = vld [vmem:[%s3 + $0x70] sm:$0xff]
  %v249 = vld [vmem:[%s3 + $0x78] sm:$0xff]
  %v250 = vld [vmem:[%s3 + $0x80] sm:$0xff]
  %v251 = vld [vmem:[%s3 + $0x88] sm:$0xff]
  %v252 = vld [vmem:[%s3 + $0x90] sm:$0xff]
  %v253 = vld [vmem:[%s3 + $0x98] sm:$0xff]
  %v254 = vld [vmem:[%s3 + $0xa0] sm:$0xff]
  %v255 = vld [vmem:[%s3 + $0xa8] sm:$0xff]
  %v256 = vld [vmem:[%s3 + $0xb0] sm:$0xff]
  %v257 = vld [vmem:[%s3 + $0xb8] sm:$0xff]
  %v258 = vld [vmem:[%s3 + $0xc0] sm:$0xff]
  %v259 = vld [vmem:[%s3 + $0xc8] sm:$0xff]
  %v260 = vld [vmem:[%s3 + $0xd0] sm:$0xff]
  %v261 = vld [vmem:[%s3 + $0xd8] sm:$0xff]
  %v262 = vld [vmem:[%s3 + $0xe0] sm:$0xff]
  %v263 = vld [vmem:[%s3 + $0xe8] sm:$0xff]
  %v264 = vld [vmem:[%s3 + $0xf0] sm:$0xff]
  %v265 = vld [vmem:[%s3 + $0xf8] sm:$0xff]
  %v266 = vld [vmem:[%s3 + $0x100] sm:$0xff]
  %v267 = vld [vmem:[%s3 + $0x108] sm:$0xff]
  %v268 = vld [vmem:[%s3 + $0x110] sm:$0xff]
  %v269 = vld [vmem:[%s3 + $0x118] sm:$0xff]
  %v270 = vld [vmem:[%s3 + $0x120] sm:$0xff]
  %v271 = vld [vmem:[%s3 + $0x128] sm:$0xff]
  %v272 = vld [vmem:[%s3 + $0x130] sm:$0xff]
  %v273 = vld [vmem:[%s3 + $0x138] sm:$0xff]
  %v274 = vld [vmem:[%s3 + $0x140] sm:$0xff]
  %v275 = vld [vmem:[%s3 + $0x148] sm:$0xff]
  %v276 = vld [vmem:[%s3 + $0x150] sm:$0xff]
  %v277 = vld [vmem:[%s3 + $0x158] sm:$0xff]
  %v278 = vld [vmem:[%s3 + $0x160] sm:$0xff]
  %v279 = vld [vmem:[%s3 + $0x168] sm:$0xff]
  %v280 = vld [vmem:[%s3 + $0x170] sm:$0xff]
  %v281 = vld [vmem:[%s3 + $0x178] sm:$0xff]
  %v282 = vld [vmem:[%s3 + $0x180] sm:$0xff]
  %v283 = vld [vmem:[%s3 + $0x188] sm:$0xff]
  %v284 = vld [vmem:[%s3 + $0x190] sm:$0xff]
  %v285 = vld [vmem:[%s3 + $0x198] sm:$0xff]
  %v286 = vld [vmem:[%s3 + $0x1a0] sm:$0xff]
  %v287 = vld [vmem:[%s3 + $0x1a8] sm:$0xff]
  %v288 = vld [vmem:[%s3 + $0x1b0] sm:$0xff]
  %v289 = vld [vmem:[%s3 + $0x1b8] sm:$0xff]
  %v290 = vld [vmem:[%s3 + $0x1c0] sm:$0xff]
  %v291 = vld [vmem:[%s3 + $0x1c8] sm:$0xff]
  %v292 = vld [vmem:[%s3 + $0x1d0] sm:$0xff]
  %v293 = vld [vmem:[%s3 + $0x1d8] sm:$0xff]
  %v294 = vld [vmem:[%s3 + $0x1e0] sm:$0xff]
  %v295 = vld [vmem:[%s3 + $0x1e8] sm:$0xff]
  %v296 = vld [vmem:[%s3 + $0x1f0] sm:$0xff]
  %v297 = vld [vmem:[%s3 + $0x1f8] sm:$0xff]
  %298 = vmatpush.msra.mxu0 %v249
  %299 = vmatpush.msra.mxu0 %v248
  %300 = vmatpush.msra.mxu0 %v247
  %301 = vmatpush.msra.mxu0 %v246
  %302 = vmatpush.msra.mxu0 %v245
  %303 = vmatpush.msra.mxu0 %v244
  %304 = vmatpush.msra.mxu0 %v243
  %305 = vmatpush.msra.mxu0 %v242
  %306 = vmatpush.msra.mxu0 %v241
  %307 = vmatpush.msra.mxu0 %v240
  %308 = vmatpush.msra.mxu0 %v239
  %309 = vmatpush.msra.mxu0 %v238
  %310 = vmatpush.msra.mxu0 %v237
  %311 = vmatpush.msra.mxu0 %v236
  %312 = vmatpush.msra.mxu0 %v235
  %313 = vmatpush.msra.mxu0 %v234
  %314 = vmatmul.f32.gmra.mxu0 %v218
  %v315 = vpop.f32.mrf.mxu0
  %v316 = vadd.f32 0.0, %v315
  %317 = vmatmul.f32.gmra.mxu0 %v222
  %v318 = vpop.f32.mrf.mxu0
  %v319 = vadd.f32 0.0, %v318
  %320 = vmatmul.f32.gmra.mxu0 %v226
  %v321 = vpop.f32.mrf.mxu0
  %v322 = vadd.f32 0.0, %v321
  %323 = vmatmul.f32.gmra.mxu0 %v230
  %v324 = vpop.f32.mrf.mxu0
  %v325 = vadd.f32 0.0, %v324
  %326 = vdwg.mxu0
  %327 = vmatpush.msra.mxu0 %v265
  %328 = vmatpush.msra.mxu0 %v264
  %329 = vmatpush.msra.mxu0 %v263
  %330 = vmatpush.msra.mxu0 %v262
  %331 = vmatpush.msra.mxu0 %v261
  %332 = vmatpush.msra.mxu0 %v260
  %333 = vmatpush.msra.mxu0 %v259
  %334 = vmatpush.msra.mxu0 %v258
  %335 = vmatpush.msra.mxu0 %v257
  %336 = vmatpush.msra.mxu0 %v256
  %337 = vmatpush.msra.mxu0 %v255
  %338 = vmatpush.msra.mxu0 %v254
  %339 = vmatpush.msra.mxu0 %v253
  %340 = vmatpush.msra.mxu0 %v252
  %341 = vmatpush.msra.mxu0 %v251
  %342 = vmatpush.msra.mxu0 %v250
  %343 = vmatmul.f32.gmra.mxu0 %v219
  %v344 = vpop.f32.mrf.mxu0
  %v345 = vadd.f32 %v316, %v344
  %346 = vmatmul.f32.gmra.mxu0 %v223
  %v347 = vpop.f32.mrf.mxu0
  %v348 = vadd.f32 %v319, %v347
  %349 = vmatmul.f32.gmra.mxu0 %v227
  %v350 = vpop.f32.mrf.mxu0
  %v351 = vadd.f32 %v322, %v350
  %352 = vmatmul.f32.gmra.mxu0 %v231
  %v353 = vpop.f32.mrf.mxu0
  %v354 = vadd.f32 %v325, %v353
  %355 = vdwg.mxu0
  %356 = vmatpush.msra.mxu0 %v281
  %357 = vmatpush.msra.mxu0 %v280
  %358 = vmatpush.msra.mxu0 %v279
  %359 = vmatpush.msra.mxu0 %v278
  %360 = vmatpush.msra.mxu0 %v277
  %361 = vmatpush.msra.mxu0 %v276
  %362 = vmatpush.msra.mxu0 %v275
  %363 = vmatpush.msra.mxu0 %v274
  %364 = vmatpush.msra.mxu0 %v273
  %365 = vmatpush.msra.mxu0 %v272
  %366 = vmatpush.msra.mxu0 %v271
  %367 = vmatpush.msra.mxu0 %v270
  %368 = vmatpush.msra.mxu0 %v269
  %369 = vmatpush.msra.mxu0 %v268
  %370 = vmatpush.msra.mxu0 %v267
  %371 = vmatpush.msra.mxu0 %v266
  %372 = vmatmul.f32.gmra.mxu0 %v220
  %v373 = vpop.f32.mrf.mxu0
  %v374 = vadd.f32 %v345, %v373
  %375 = vmatmul.f32.gmra.mxu0 %v224
  %v376 = vpop.f32.mrf.mxu0
  %v377 = vadd.f32 %v348, %v376
  %378 = vmatmul.f32.gmra.mxu0 %v228
  %v379 = vpop.f32.mrf.mxu0
  %v380 = vadd.f32 %v351, %v379
  %381 = vmatmul.f32.gmra.mxu0 %v232
  %v382 = vpop.f32.mrf.mxu0
  %v383 = vadd.f32 %v354, %v382
  %384 = vdwg.mxu0
  %385 = vmatpush.msra.mxu0 %v297
  %386 = vmatpush.msra.mxu0 %v296
  %387 = vmatpush.msra.mxu0 %v295
  %388 = vmatpush.msra.mxu0 %v294
  %389 = vmatpush.msra.mxu0 %v293
  %390 = vmatpush.msra.mxu0 %v292
  %391 = vmatpush.msra.mxu0 %v291
  %392 = vmatpush.msra.mxu0 %v290
  %393 = vmatpush.msra.mxu0 %v289
  %394 = vmatpush.msra.mxu0 %v288
  %395 = vmatpush.msra.mxu0 %v287
  %396 = vmatpush.msra.mxu0 %v286
  %397 = vmatpush.msra.mxu0 %v285
  %398 = vmatpush.msra.mxu0 %v284
  %399 = vmatpush.msra.mxu0 %v283
  %400 = vmatpush.msra.mxu0 %v282
  %401 = vmatmul.f32.gmra.mxu0 %v221
  %v402 = vpop.f32.mrf.mxu0
  %v403 = vadd.f32 %v374, %v402
  %404 = vmatmul.f32.gmra.mxu0 %v225
  %v405 = vpop.f32.mrf.mxu0
  %v406 = vadd.f32 %v377, %v405
  %407 = vmatmul.f32.gmra.mxu0 %v229
  %v408 = vpop.f32.mrf.mxu0
  %v409 = vadd.f32 %v380, %v408
  %410 = vmatmul.f32.gmra.mxu0 %v233
  %v411 = vpop.f32.mrf.mxu0
  %v412 = vadd.f32 %v383, %v411
  %413 = vdwg.mxu0
  %v414 = vld [vmem:[%s4] sm:$0xff]
  %v415 = vld [vmem:[%s4 + $0x8] sm:$0xff]
  %v416 = vld [vmem:[%s4 + $0x10] sm:$0xff]
  %v417 = vld [vmem:[%s4 + $0x18] sm:$0xff]
  %v418 = vld [vmem:[%s4 + $0x20] sm:$0xff]
  %v419 = vld [vmem:[%s5] sm:$0xff]
  %v420 = vld [vmem:[%s5 + $0x8] sm:$0xff]
  %v421 = vld [vmem:[%s5 + $0x10] sm:$0xff]
  %v422 = vld [vmem:[%s5 + $0x18] sm:$0xff]
  %v423 = vld [vmem:[%s5 + $0x20] sm:$0xff]
  %425 = vset.pattern.permute.xlu0 0
  %426 = vperm.xlu0 %425, %v419
  %v427 = vpop.permute.xlu0 %426
  %430 = vset.pattern.permute.xlu0 0
  %431 = vperm.xlu0 %430, %v420
  %v432 = vpop.permute.xlu0 %431
  %435 = vset.pattern.permute.xlu0 0
  %436 = vperm.xlu0 %435, %v421
  %v437 = vpop.permute.xlu0 %436
  %440 = vset.pattern.permute.xlu0 0
  %441 = vperm.xlu0 %440, %v422
  %v442 = vpop.permute.xlu0 %441
  %445 = vset.pattern.permute.xlu0 0
  %446 = vperm.xlu0 %445, %v423
  %v447 = vpop.permute.xlu0 %446
  %vm449 = vcmask 261120
  %v451 = vsel %vm449, %v414, 0
  %v454 = vsel %vm449, %v415, 0
  %v457 = vsel %vm449, %v416, 0
  %v460 = vsel %vm449, %v417, 0
  %v463 = vsel %vm449, %v418, 0
  %465 = vmatpush.msra.mxu0 0.0
  %466 = vmatpush.msra.mxu0 0.0
  %467 = vmatpush.msra.mxu0 0.0
  %468 = vmatpush.msra.mxu0 0.0
  %469 = vmatpush.msra.mxu0 0.0
  %470 = vmatpush.msra.mxu0 0.0
  %471 = vmatpush.msra.mxu0 0.0
  %472 = vmatpush.msra.mxu0 0.0
  %473 = vmatpush.msra.mxu0 0.0
  %474 = vmatpush.msra.mxu0 0.0
  %475 = vmatpush.msra.mxu0 0.0
  %476 = vmatpush.msra.mxu0 0.0
  %477 = vmatpush.msra.mxu0 %v412
  %478 = vmatpush.msra.mxu0 %v409
  %479 = vmatpush.msra.mxu0 %v406
  %480 = vmatpush.msra.mxu0 %v403
  %481 = vmatmul.f32.gmra.mxu0 %v451
  %v482 = vpop.f32.mrf.mxu0
  %v483 = vadd.f32 %v427, %v482
  %484 = vmatmul.f32.gmra.mxu0 %v454
  %v485 = vpop.f32.mrf.mxu0
  %v486 = vadd.f32 %v432, %v485
  %487 = vmatmul.f32.gmra.mxu0 %v457
  %v488 = vpop.f32.mrf.mxu0
  %v489 = vadd.f32 %v437, %v488
  %490 = vmatmul.f32.gmra.mxu0 %v460
  %v491 = vpop.f32.mrf.mxu0
  %v492 = vadd.f32 %v442, %v491
  %493 = vmatmul.f32.gmra.mxu0 %v463
  %v494 = vpop.f32.mrf.mxu0
  %v495 = vadd.f32 %v447, %v494
  %496 = vdwg.mxu0
  %vm497 = vcmask 15360
  %498 = vst.msk [vmem:[%s6] sm:$0xff] %vm497, %v483
  %499 = vst.msk [vmem:[%s6 + $0x8] sm:$0xff] %vm497, %v486
  %500 = vst.msk [vmem:[%s6 + $0x10] sm:$0xff] %vm497, %v489
  %501 = vst.msk [vmem:[%s6 + $0x18] sm:$0xff] %vm497, %v492
  %502 = vst.msk [vmem:[%s6 + $0x20] sm:$0xff] %vm497, %v495
  // Predicated region
  $region26: #{tpu_custom_call.1} parent=0 // pred_check
    _
  $region27: #{tpu_custom_call.1} parent=0 // pred_check_branch
    %504 = sbr.rel (0) target = $region29
  $region28: #{tpu_custom_call.1} parent=0 // pred_region
    _
  $region29: #{tpu_custom_call.1} parent=0 // pred_fallthru
    _
  // Predicated region
  $region30: #{tpu_custom_call.1} parent=0 // pred_check
    _
  $region31: #{tpu_custom_call.1} parent=0 // pred_check_branch
    %506 = sbr.rel (0) target = $region33
  $region32: #{tpu_custom_call.1} parent=0 // pred_region
    _
  $region33: #{tpu_custom_call.1} parent=0 // pred_fallthru
    _

</llo_original>
